<compile_context>
chip_gen: v7x
topology: tpu7x:2x2x1
jax: 0.10.0
libtpu: 0.0.40
codegen_flags: <defaults>
</compile_context>

<pallas_src>
import jax
import jax.numpy as jnp
from jax.experimental import pallas as pl
from jax.experimental.pallas import tpu as pltpu

LANES = 128
MAX_ROW_TILE = 8192    # (8192, 128) f32 = 4 MiB per input block
ACC_ROWS = 64          # per-core accumulator block: (64, 128) f32


def _cdiv(a, b):
    return -(-a // b)


def _round_up(a, b):
    return _cdiv(a, b) * b


def _num_tensorcores():
    """2 on multi-TensorCore chips (v7x / v4 megacore), else 1."""
    try:
        kind = (jax.devices()[0].device_kind or "").lower()
    except Exception:
        return 1
    if any(tag in kind for tag in ("v7", "tpu7", "7x", "v4")):
        return 2
    return 1


def _make_mse_kernel(rows, row_tile, tiles_per_core, last_block,
                     has_partial, has_dup):
    """Sum of squared differences, accumulated into an (ACC_ROWS, 128) f32 block per core."""
    folds = row_tile // ACC_ROWS

    def accum(fs_ref, ft_ref, out_ref, row_start=None):
        d = fs_ref[...].astype(jnp.float32) - ft_ref[...].astype(jnp.float32)
        if row_start is not None:
            # Only the partial edge block pays for the mask.
            row_ids = row_start + jax.lax.broadcasted_iota(
                jnp.int32, (row_tile, LANES), 0)
            d = jnp.where(row_ids < rows, d, 0.0)
        sq = d * d
        # Fold (row_tile, 128) onto the (ACC_ROWS, 128) accumulator with pure
        # VPU adds; ACC_ROWS=64 gives 8 independent vreg chains per step.
        out_ref[...] += sq.reshape(folds, ACC_ROWS, LANES).sum(axis=0)

    def kernel(fs_ref, ft_ref, out_ref):
        i = pl.program_id(1)  # arbitrary (reduction) axis

        @pl.when(i == 0)
        def _():
            out_ref[...] = jnp.zeros_like(out_ref)

        if not has_partial and not has_dup:
            # Fast path: every block is full and unique -> no masks, no branches.
            accum(fs_ref, ft_ref, out_ref)
        else:
            nominal = pl.program_id(0) * tiles_per_core + i
            if has_partial:
                @pl.when(nominal < last_block)
                def _():
                    accum(fs_ref, ft_ref, out_ref)

                @pl.when(nominal == last_block)
                def _():
                    accum(fs_ref, ft_ref, out_ref,
                          row_start=last_block * row_tile)
                # nominal > last_block: clamped duplicate -> skip entirely.
            else:
                # Only clamped duplicates possible: skip them.
                @pl.when(nominal <= last_block)
                def _():
                    accum(fs_ref, ft_ref, out_ref)

    return kernel


def fitnets_loss(f_s, f_t):
    """FitNets hint loss: mean((f_s - f_t)**2) over all elements (== nn.MSELoss)."""
    assert f_s.shape == f_t.shape, "FitNets requires matching feature shapes"
    n_elems = int(f_s.size)
    num_cores = _num_tensorcores()

    fs_flat = jnp.ravel(f_s)
    ft_flat = jnp.ravel(f_t)

    rows_exact = n_elems // LANES
    tail = n_elems - rows_exact * LANES
    tail_sum = jnp.float32(0.0)

    if rows_exact >= MAX_ROW_TILE:
        # Large streaming path: no full-array padding copy. The kernel covers
        # the 128-aligned prefix (the ragged last block is handled by the
        # in-kernel row mask); any <128-element tail is one tiny XLA op.
        rows = rows_exact
        row_tile = MAX_ROW_TILE
        if tail:
            main = rows * LANES
            ts = fs_flat[main:].astype(jnp.float32)
            tt = ft_flat[main:].astype(jnp.float32)
            tail_sum = jnp.sum((ts - tt) ** 2)
            # TODO(synk): the prefix slice may still materialize an XLA copy;
            # fusing the tail into a final in-kernel block would avoid it.
            fs_flat = fs_flat[:main]
            ft_flat = ft_flat[:main]
    else:
        # Small/medium path (<4 MiB per input): cheap zero-pad so every block
        # is full and each core gets exactly one full tile -> mask-free kernel.
        granule = ACC_ROWS * num_cores
        rows_needed = rows_exact + (1 if tail else 0)
        rows = _round_up(max(rows_needed, 1), granule)
        pad = rows * LANES - n_elems
        if pad:
            # Identical zero padding on both sides -> contributes 0 to the sum.
            fs_flat = jnp.pad(fs_flat, (0, pad))
            ft_flat = jnp.pad(ft_flat, (0, pad))
        row_tile = rows // num_cores

    fs_2d = fs_flat.reshape(rows, LANES)
    ft_2d = ft_flat.reshape(rows, LANES)

    tiles = _cdiv(rows, row_tile)
    tiles_per_core = _cdiv(tiles, num_cores)
    last_block = tiles - 1
    has_partial = (rows % row_tile) != 0
    has_dup = (num_cores * tiles_per_core) != tiles

    def in_index_map(c, i):
        # Clamp so every DMA stays in-bounds; over-covered blocks are either
        # skipped (pure duplicates) or masked (partial edge) inside the kernel.
        return (jnp.minimum(c * tiles_per_core + i, last_block), 0)

    kernel = _make_mse_kernel(rows, row_tile, tiles_per_core, last_block,
                              has_partial, has_dup)

    in_bytes = jnp.dtype(f_s.dtype).itemsize + jnp.dtype(f_t.dtype).itemsize
    block_bytes = row_tile * LANES * in_bytes          # one buffer set (both inputs)
    # Explicit scoped-VMEM budget: double-buffered inputs + headroom; needed on
    # v5e (16 MiB default) and harmless on v6e/v7x.
    vmem_limit = int(min(48 << 20, max(32 << 20, 2 * block_bytes + (8 << 20))))

    partials = pl.pallas_call(
        kernel,
        out_shape=jax.ShapeDtypeStruct((num_cores, ACC_ROWS, LANES), jnp.float32),
        grid_spec=pltpu.PrefetchScalarGridSpec(
            num_scalar_prefetch=0,
            grid=(num_cores, tiles_per_core),
            in_specs=[
                pl.BlockSpec((row_tile, LANES), in_index_map),
                pl.BlockSpec((row_tile, LANES), in_index_map),
            ],
            out_specs=pl.BlockSpec((None, ACC_ROWS, LANES), lambda c, i: (c, 0, 0)),
        ),
        compiler_params=pltpu.CompilerParams(
            dimension_semantics=("parallel", "arbitrary"),
            vmem_limit_bytes=vmem_limit,
        ),
        cost_estimate=pl.CostEstimate(
            flops=3 * n_elems,
            transcendentals=0,
            bytes_accessed=n_elems * in_bytes + num_cores * ACC_ROWS * LANES * 4,
        ),
    )(fs_2d, ft_2d)

    # Tiny final reduction + mean outside the kernel (one XLA op on 2x64x128).
    return (jnp.sum(partials) + tail_sum) / jnp.float32(n_elems)


if __name__ == "__main__":
    key = jax.random.PRNGKey(0)
    k1, k2 = jax.random.split(key)

    # NCHW feature maps: batch=2, channels=4, spatial=16x16.
    f_s = jax.random.normal(k1, (2, 4, 16, 16), dtype=jnp.float32)
    f_t = jax.random.normal(k2, (2, 4, 16, 16), dtype=jnp.float32)

    loss = fitnets_loss(f_s, f_t)
    jax.block_until_ready(loss)
    ref = jnp.mean((f_s - f_t) ** 2)
    assert jnp.allclose(loss, ref, rtol=1e-5, atol=1e-6), (loss, ref)

    # Lane-misaligned small input -> padded, mask-free medium path.
    k3, k4 = jax.random.split(k2)
    g_s = jax.random.normal(k3, (3, 5, 7, 11), dtype=jnp.float32)
    g_t = jax.random.normal(k4, (3, 5, 7, 11), dtype=jnp.float32)
    loss2 = fitnets_loss(g_s, g_t)
    jax.block_until_ready(loss2)
    ref2 = jnp.mean((g_s - g_t) ** 2)
    assert jnp.allclose(loss2, ref2, rtol=1e-5, atol=1e-6), (loss2, ref2)

    # Large, lane-misaligned input -> streaming path with partial edge block,
    # clamped-duplicate skip, and the tiny tail reduction.
    k5, k6 = jax.random.split(k4)
    n_big = MAX_ROW_TILE * LANES + 3 * LANES + 40   # 8195 full rows + 40-elem tail
    h_s = jax.random.normal(k5, (n_big,), dtype=jnp.float32)
    h_t = jax.random.normal(k6, (n_big,), dtype=jnp.float32)
    loss3 = fitnets_loss(h_s, h_t)
    jax.block_until_ready(loss3)
    ref3 = jnp.mean((h_s - h_t) ** 2)
    assert jnp.allclose(loss3, ref3, rtol=1e-4, atol=1e-6), (loss3, ref3)

    print("KERNEL_OK")
</pallas_src>

<mosaic_0001>
module attributes {stable_mosaic.version = 11 : i64} {
  func.func @kernel(%arg0: i32, %arg1: i32, %arg2: memref<64x128xf32, #tpu.memory_space<vmem>>, %arg3: memref<64x128xf32, #tpu.memory_space<vmem>>, %arg4: memref<1x64x128xf32, #tpu.memory_space<vmem>>) attributes {dimension_semantics = [#tpu.dimension_semantics<parallel>, #tpu.dimension_semantics<arbitrary>], iteration_bounds = array<i64: 1, 1>, scalar_prefetch = 0 : i64, scratch_operands = 0 : i64, tpu.core_type = #tpu.core_type<tc>, window_params = [{transform_indices = @transform_0, window_bounds = array<i64: 64, 128>}, {transform_indices = @transform_1, window_bounds = array<i64: 64, 128>}, {transform_indices = @transform_2, window_bounds = array<i64: 1, 64, 128>}]} {
    %c0_i32 = arith.constant 0 : i32
    %0 = arith.cmpi eq, %arg1, %c0_i32 : i32
    %1 = arith.extui %0 : i1 to i32
    %c0_i32_0 = arith.constant 0 : i32
    %2 = arith.cmpi ne, %1, %c0_i32_0 : i32
    scf.if %2 {
      %cst_10 = arith.constant 0.000000e+00 : f32
      %15 = vector.broadcast %cst_10 : f32 to vector<64x128xf32>
      %c0_11 = arith.constant 0 : index
      %c0_12 = arith.constant 0 : index
      %c0_13 = arith.constant 0 : index
      %16 = vector.load %arg4[%c0_11, %c0_12, %c0_13] : memref<1x64x128xf32, #tpu.memory_space<vmem>>, vector<1x64x128xf32>
      %17 = vector.shape_cast %16 : vector<1x64x128xf32> to vector<64x128xf32>
      %18 = vector.shape_cast %15 : vector<64x128xf32> to vector<1x64x128xf32>
      tpu.vector_store %arg4[%c0_11, %c0_12, %c0_13], %18 {strides = array<i32>} : memref<1x64x128xf32, #tpu.memory_space<vmem>>, vector<1x64x128xf32>,
    } else {
    }
    %c0 = arith.constant 0 : index
    %c0_1 = arith.constant 0 : index
    %3 = vector.load %arg2[%c0, %c0_1] : memref<64x128xf32, #tpu.memory_space<vmem>>, vector<64x128xf32>
    %c0_2 = arith.constant 0 : index
    %c0_3 = arith.constant 0 : index
    %4 = vector.load %arg3[%c0_2, %c0_3] : memref<64x128xf32, #tpu.memory_space<vmem>>, vector<64x128xf32>
    %5 = arith.subf %3, %4 : vector<64x128xf32>
    %6 = arith.mulf %5, %5 : vector<64x128xf32>
    %c0_4 = arith.constant 0 : index
    %c0_5 = arith.constant 0 : index
    %c0_6 = arith.constant 0 : index
    %7 = vector.load %arg4[%c0_4, %c0_5, %c0_6] : memref<1x64x128xf32, #tpu.memory_space<vmem>>, vector<1x64x128xf32>
    %8 = vector.shape_cast %7 : vector<1x64x128xf32> to vector<64x128xf32>
    %9 = vector.shape_cast %6 : vector<64x128xf32> to vector<1x64x128xf32>
    %cst = arith.constant dense<0.000000e+00> : vector<64x128xf32>
    %10 = vector.multi_reduction <add>, %9, %cst [0] : vector<1x64x128xf32> to vector<64x128xf32>
    %11 = arith.addf %8, %10 : vector<64x128xf32>
    %c0_7 = arith.constant 0 : index
    %c0_8 = arith.constant 0 : index
    %c0_9 = arith.constant 0 : index
    %12 = vector.load %arg4[%c0_7, %c0_8, %c0_9] : memref<1x64x128xf32, #tpu.memory_space<vmem>>, vector<1x64x128xf32>
    %13 = vector.shape_cast %12 : vector<1x64x128xf32> to vector<64x128xf32>
    %14 = vector.shape_cast %11 : vector<64x128xf32> to vector<1x64x128xf32>
    tpu.vector_store %arg4[%c0_7, %c0_8, %c0_9], %14 {strides = array<i32>} : memref<1x64x128xf32, #tpu.memory_space<vmem>>, vector<1x64x128xf32>,
    return
  }
  func.func @transform_0(%arg0: i32, %arg1: i32) -> (i32, i32) {
    %c1_i32 = arith.constant 1 : i32
    %0 = arith.muli %arg0, %c1_i32 : i32
    %1 = arith.addi %0, %arg1 : i32
    %c0_i32 = arith.constant 0 : i32
    %2 = arith.minsi %1, %c0_i32 : i32
    %c0_i32_0 = arith.constant 0 : i32
    %c0_i32_1 = arith.constant 0 : i32
    return %2, %c0_i32_0 : i32, i32
  }
  func.func @transform_1(%arg0: i32, %arg1: i32) -> (i32, i32) {
    %c1_i32 = arith.constant 1 : i32
    %0 = arith.muli %arg0, %c1_i32 : i32
    %1 = arith.addi %0, %arg1 : i32
    %c0_i32 = arith.constant 0 : i32
    %2 = arith.minsi %1, %c0_i32 : i32
    %c0_i32_0 = arith.constant 0 : i32
    %c0_i32_1 = arith.constant 0 : i32
    return %2, %c0_i32_0 : i32, i32
  }
  func.func @transform_2(%arg0: i32, %arg1: i32) -> (i32, i32, i32) {
    %c0_i32 = arith.constant 0 : i32
    %c0_i32_0 = arith.constant 0 : i32
    %c0_i32_1 = arith.constant 0 : i32
    return %arg0, %c0_i32, %c0_i32_0 : i32, i32, i32
  }
}

</mosaic_0001>

<llo_original>
// kernel: tpu_custom_call.1
$region0: #{tpu_custom_call.1}
  #allocation0 [shape = 'u32[]', space=smem, size = 0x4, offset = 0x4, fixed_abs, tag = 'smem constant byte address 0x4 - core index']
  #allocation1 [shape = 'u32[144,128]{1,0:T(1,128)}', space=vmem, size = 0x12000, scoped, tag = 'internal scratch']
  %s0 = inlined_call_operand.hbm [shape: f32[64,128], index: 0, kind: input, shape index: {}]
  %s1 = inlined_call_operand.hbm [shape: f32[64,128], index: 1, kind: input, shape index: {}]
  %s2 = inlined_call_operand.hbm [shape: f32[1,64,128], index: 2, kind: output, shape index: {}]
  %s3 = sld [smem:[#allocation0]]
  $region30: #{tpu_custom_call.1} parent=0
    _
  %s5 = ssub.s32 1, %s3
  %s6 = scalar_select 0, %s5, %s3
  $region1: #{tpu_custom_call.1} parent=0
    #allocation2 [shape = 'u8[32768]{0}', space=vmem, size = 0x8000, scoped, tag = 'input window, operand 0, single buffered']
    #allocation3 [shape = 's32[1]{0}', space=sflag, size = 0x4, scoped, tag = 'scoped memory for tpu_custom_call.1']
    #allocation4 [shape = 's32[1]{0}', space=sflag, size = 0x4, scoped, tag = 'scoped memory for tpu_custom_call.1']
    #allocation5 [shape = 'u8[32768]{0}', space=vmem, size = 0x8000, scoped, tag = 'input window, operand 1, single buffered']
    #allocation6 [shape = 's32[1]{0}', space=sflag, size = 0x4, scoped, tag = 'scoped memory for tpu_custom_call.1']
    #allocation7 [shape = 'u8[32768]{0}', space=vmem, size = 0x8000, scoped, tag = 'output window, operand 0, single buffered']
    %7 = vsyncpa [#allocation3], 0
    %8 = vsyncpa [#allocation6], 0
    %9 = vsyncpa [#allocation4], 0
    // Predicated region
    $region2: #{tpu_custom_call.1} parent=1 // pred_check
      _
    $region3: #{tpu_custom_call.1} parent=1 // pred_check_branch
      %11 = sbr.rel (0) target = $region5
    $region4: #{tpu_custom_call.1} parent=1 // pred_region
      %s12 = sadd.s32 0, 0
      %p13 = scmp.lt.s32.totalorder %s12, 0
      %s14 = scalar_select %p13, %s12, 0
      %s15 = smul.u32 8, %s14
      %s17 = ssub.s32 1024, 1024
      %18 = vsyncadd [#allocation3], %s17
      %s19 = smul.addr %s15, 128
      %s20 = scalar_lea.hbm %s0, %s19
      %s21 = sshll.u32 [#allocation2], 4
      %s22 = int_to_ptr.vmem [resolvable:$true] %s21
      %27 = dma.hbm_to_vmem [thread:$0]  %s20, 1024, %s22, [#allocation3], 128, 128, 8
    $region5: #{tpu_custom_call.1} parent=1 // pred_fallthru
      _
    // Predicated region
    $region6: #{tpu_custom_call.1} parent=1 // pred_check
      _
    $region7: #{tpu_custom_call.1} parent=1 // pred_check_branch
      %29 = sbr.rel (0) target = $region9
    $region8: #{tpu_custom_call.1} parent=1 // pred_region
      %s30 = sadd.s32 0, 0
      %p31 = scmp.lt.s32.totalorder %s30, 0
      %s32 = scalar_select %p31, %s30, 0
      %s33 = smul.u32 8, %s32
      %s35 = ssub.s32 1024, 1024
      %36 = vsyncadd [#allocation6], %s35
      %s37 = smul.addr %s33, 128
      %s38 = scalar_lea.hbm %s1, %s37
      %s39 = sshll.u32 [#allocation5], 4
      %s40 = int_to_ptr.vmem [resolvable:$true] %s39
      %45 = dma.hbm_to_vmem [thread:$0]  %s38, 1024, %s40, [#allocation6], 128, 128, 8
    $region9: #{tpu_custom_call.1} parent=1 // pred_fallthru
      _
    // Predicated region
    $region10: #{tpu_custom_call.1} parent=1 // pred_check
      _
    $region11: #{tpu_custom_call.1} parent=1 // pred_check_branch
      %47 = sbr.rel (0) target = $region13
    $region12: #{tpu_custom_call.1} parent=1 // pred_region
      %48 = dma.done [#allocation3], 1024
    $region13: #{tpu_custom_call.1} parent=1 // pred_fallthru
      _
    // Predicated region
    $region14: #{tpu_custom_call.1} parent=1 // pred_check
      _
    $region15: #{tpu_custom_call.1} parent=1 // pred_check_branch
      %50 = sbr.rel (0) target = $region17
    $region16: #{tpu_custom_call.1} parent=1 // pred_region
      %51 = dma.done [#allocation6], 1024
    $region17: #{tpu_custom_call.1} parent=1 // pred_fallthru
      _
    %s52 = sadd.s32 0, 0
    %p53 = scmp.lt.s32.totalorder %s52, 0
    %s54 = scalar_select %p53, %s52, 0
    %s55 = smul.u32 8, %s54
    %s56 = sadd.s32 0, 0
    %p57 = scmp.lt.s32.totalorder %s56, 0
    %s58 = scalar_select %p57, %s56, 0
    %s59 = smul.u32 8, %s58
    %p60 = scmp.eq.s32.totalorder 0, 0
    // Predicated region
    $region18: #{tpu_custom_call.1} parent=1 // pred_check
      %p61 = pneg %p60
    $region19: #{tpu_custom_call.1} parent=1 // pred_check_branch
      %63 = sbr.rel (%p61) target = $region21
    $region20: #{tpu_custom_call.1} parent=1 // pred_region
      %64 = vst [vmem:[#allocation7] sm:$0xff] 0.0
      %65 = vst [vmem:[#allocation7 + $0x8] sm:$0xff] 0.0
      %66 = vst [vmem:[#allocation7 + $0x10] sm:$0xff] 0.0
      %67 = vst [vmem:[#allocation7 + $0x18] sm:$0xff] 0.0
      %68 = vst [vmem:[#allocation7 + $0x20] sm:$0xff] 0.0
      %69 = vst [vmem:[#allocation7 + $0x28] sm:$0xff] 0.0
      %70 = vst [vmem:[#allocation7 + $0x30] sm:$0xff] 0.0
      %71 = vst [vmem:[#allocation7 + $0x38] sm:$0xff] 0.0
    $region21: #{tpu_custom_call.1} parent=1 // pred_fallthru
      _
    %v72 = vld [vmem:[#allocation2] sm:$0xff]
    %v73 = vld [vmem:[#allocation2 + $0x8] sm:$0xff]
    %v74 = vld [vmem:[#allocation2 + $0x10] sm:$0xff]
    %v75 = vld [vmem:[#allocation2 + $0x18] sm:$0xff]
    %v76 = vld [vmem:[#allocation2 + $0x20] sm:$0xff]
    %v77 = vld [vmem:[#allocation2 + $0x28] sm:$0xff]
    %v78 = vld [vmem:[#allocation2 + $0x30] sm:$0xff]
    %v79 = vld [vmem:[#allocation2 + $0x38] sm:$0xff]
    %v80 = vld [vmem:[#allocation5] sm:$0xff]
    %v81 = vld [vmem:[#allocation5 + $0x8] sm:$0xff]
    %v82 = vld [vmem:[#allocation5 + $0x10] sm:$0xff]
    %v83 = vld [vmem:[#allocation5 + $0x18] sm:$0xff]
    %v84 = vld [vmem:[#allocation5 + $0x20] sm:$0xff]
    %v85 = vld [vmem:[#allocation5 + $0x28] sm:$0xff]
    %v86 = vld [vmem:[#allocation5 + $0x30] sm:$0xff]
    %v87 = vld [vmem:[#allocation5 + $0x38] sm:$0xff]
    %v88 = vsub.f32 %v72, %v80
    %v89 = vsub.f32 %v73, %v81
    %v90 = vsub.f32 %v74, %v82
    %v91 = vsub.f32 %v75, %v83
    %v92 = vsub.f32 %v76, %v84
    %v93 = vsub.f32 %v77, %v85
    %v94 = vsub.f32 %v78, %v86
    %v95 = vsub.f32 %v79, %v87
    %v96 = vmul.f32 %v88, %v88
    %v97 = vmul.f32 %v89, %v89
    %v98 = vmul.f32 %v90, %v90
    %v99 = vmul.f32 %v91, %v91
    %v100 = vmul.f32 %v92, %v92
    %v101 = vmul.f32 %v93, %v93
    %v102 = vmul.f32 %v94, %v94
    %v103 = vmul.f32 %v95, %v95
    %v104 = vld [vmem:[#allocation7] sm:$0xff]
    %v105 = vld [vmem:[#allocation7 + $0x8] sm:$0xff]
    %v106 = vld [vmem:[#allocation7 + $0x10] sm:$0xff]
    %v107 = vld [vmem:[#allocation7 + $0x18] sm:$0xff]
    %v108 = vld [vmem:[#allocation7 + $0x20] sm:$0xff]
    %v109 = vld [vmem:[#allocation7 + $0x28] sm:$0xff]
    %v110 = vld [vmem:[#allocation7 + $0x30] sm:$0xff]
    %v111 = vld [vmem:[#allocation7 + $0x38] sm:$0xff]
    %v112 = vadd.f32 %v96, 0.0
    %v113 = vadd.f32 %v97, 0.0
    %v114 = vadd.f32 %v98, 0.0
    %v115 = vadd.f32 %v99, 0.0
    %v116 = vadd.f32 %v100, 0.0
    %v117 = vadd.f32 %v101, 0.0
    %v118 = vadd.f32 %v102, 0.0
    %v119 = vadd.f32 %v103, 0.0
    %v120 = vadd.f32 %v104, %v112
    %v121 = vadd.f32 %v105, %v113
    %v122 = vadd.f32 %v106, %v114
    %v123 = vadd.f32 %v107, %v115
    %v124 = vadd.f32 %v108, %v116
    %v125 = vadd.f32 %v109, %v117
    %v126 = vadd.f32 %v110, %v118
    %v127 = vadd.f32 %v111, %v119
    %128 = vst [vmem:[#allocation7] sm:$0xff] %v120
    %129 = vst [vmem:[#allocation7 + $0x8] sm:$0xff] %v121
    %130 = vst [vmem:[#allocation7 + $0x10] sm:$0xff] %v122
    %131 = vst [vmem:[#allocation7 + $0x18] sm:$0xff] %v123
    %132 = vst [vmem:[#allocation7 + $0x20] sm:$0xff] %v124
    %133 = vst [vmem:[#allocation7 + $0x28] sm:$0xff] %v125
    %134 = vst [vmem:[#allocation7 + $0x30] sm:$0xff] %v126
    %135 = vst [vmem:[#allocation7 + $0x38] sm:$0xff] %v127
    // Predicated region
    $region22: #{tpu_custom_call.1} parent=1 // pred_check
      _
    $region23: #{tpu_custom_call.1} parent=1 // pred_check_branch
      %137 = sbr.rel (0) target = $region25
    $region24: #{tpu_custom_call.1} parent=1 // pred_region
      %s139 = ssub.s32 1024, 1024
      %140 = vsyncadd [#allocation4], %s139
      %s141 = sshll.u32 [#allocation7], 4
      %s142 = int_to_ptr.vmem [resolvable:$true] %s141
      %147 = dma.vmem_to_hbm [thread:$0]  %s142, 1024, %s2, [#allocation4], 128, 128, 8
    $region25: #{tpu_custom_call.1} parent=1 // pred_fallthru
      _
    // Predicated region
    $region26: #{tpu_custom_call.1} parent=1 // pred_check
      _
    $region27: #{tpu_custom_call.1} parent=1 // pred_check_branch
      %149 = sbr.rel (0) target = $region29
    $region28: #{tpu_custom_call.1} parent=1 // pred_region
      %150 = dma.done [#allocation4], 1024
    $region29: #{tpu_custom_call.1} parent=1 // pred_fallthru
      _
    %151 = vsyncpa [#allocation3], 1
    %152 = vsyncpa [#allocation6], 1
    %153 = vsyncpa [#allocation4], 1

</llo_original>
